<compile_context>
chip_gen: v6e
topology: v6e:2x2x1
jax: 0.10.0
libtpu: 0.0.40
codegen_flags: <defaults>
</compile_context>

<pallas_src>
import functools

import jax
import jax.numpy as jnp
from jax.experimental import pallas as pl
from jax.experimental.pallas import tpu as pltpu

_LANES = 128


def _partial_sumsq_kernel(n_rows, tile_rows, needs_mask, t_ref, p_ref, o_ref):
    """One grid step: sum of squared differences over this (tile_rows, 128)
    tile, reduced over the sublane (row) axis only -> (1, 1, 128) partial."""
    t = t_ref[...].astype(jnp.float32)
    p = p_ref[...].astype(jnp.float32)
    d = t - p
    if needs_mask:
        # The last block may overhang the array; zero out the invalid rows.
        i = pl.program_id(0)
        valid = n_rows - i * tile_rows
        row_ids = jax.lax.broadcasted_iota(jnp.int32, (tile_rows, 1), 0)
        d = jnp.where(row_ids < valid, d, 0.0)
    o_ref[...] = jnp.sum(d * d, axis=0, keepdims=True).reshape(1, 1, _LANES)


def _min_sublane(dtype):
    # f32 -> 8 sublanes, bf16/f16 -> 16, int8/fp8 -> 32
    return max(8, 32 // jnp.dtype(dtype).itemsize)


def recommend_loss(target, pred, *, tile_rows=4096):
    """RMSE between target and pred (any matching shapes); returns f32 scalar."""
    assert target.shape == pred.shape
    total = int(target.size)
    if total == 0:
        return jnp.float32(0.0)

    t_flat = jnp.ravel(target)
    p_flat = jnp.ravel(pred)

    # Pad only the sub-row remainder (< 128 elems). Identical zero pads on both
    # arrays contribute 0 to the squared difference, so no masking is needed
    # for them. When total % 128 == 0 (the common case) this is a no-op and the
    # reshape below is free.
    rem = total % _LANES
    if rem != 0:
        t_flat = jnp.pad(t_flat, (0, _LANES - rem))
        p_flat = jnp.pad(p_flat, (0, _LANES - rem))
    n_rows = (total + _LANES - 1) // _LANES

    t2 = t_flat.reshape(n_rows, _LANES)
    p2 = p_flat.reshape(n_rows, _LANES)

    # Tile height: as large as requested, clipped to the array, and a multiple
    # of the dtype's minimum sublane tiling (unless the whole array is shorter
    # than that, in which case a block equal to the full dim is allowed).
    sub = max(_min_sublane(target.dtype), _min_sublane(pred.dtype))
    if n_rows >= sub:
        tr = max(sub, (min(tile_rows, n_rows) // sub) * sub)
    else:
        tr = n_rows
    num_blocks = -(-n_rows // tr)
    needs_mask = (n_rows % tr) != 0

    kernel = functools.partial(_partial_sumsq_kernel, n_rows, tr, needs_mask)

    partials = pl.pallas_call(
        kernel,
        out_shape=jax.ShapeDtypeStruct((num_blocks, 1, _LANES), jnp.float32),
        grid_spec=pltpu.PrefetchScalarGridSpec(
            num_scalar_prefetch=0,
            grid=(num_blocks,),
            in_specs=[
                pl.BlockSpec((tr, _LANES), lambda i: (i, 0)),
                pl.BlockSpec((tr, _LANES), lambda i: (i, 0)),
            ],
            out_specs=pl.BlockSpec((1, 1, _LANES), lambda i: (i, 0, 0)),
        ),
        compiler_params=pltpu.CompilerParams(
            # Each grid step writes an independent output block, so the grid
            # axis is embarrassingly parallel (megacore-shardable on v7x).
            dimension_semantics=("parallel",)
        ),
    )(t2, p2)

    # Tiny final reduction (num_blocks * 128 floats) + sqrt in plain JAX.
    return jnp.sqrt(jnp.sum(partials) / jnp.float32(total))


if __name__ == "__main__":
    key = jax.random.PRNGKey(0)
    k1, k2 = jax.random.split(key)

    # Small shapes consistent with the module (forward accepts any matching
    # shapes; use a typical (batch, channels, H, W) example).
    shape = (2, 4, 16, 16)
    target = jax.random.normal(k1, shape, dtype=jnp.float32)
    pred = jax.random.normal(k2, shape, dtype=jnp.float32)

    loss = recommend_loss(target, pred)
    loss = jax.block_until_ready(loss)

    # Reference check (plain JAX, same math as the PyTorch module).
    ref = jnp.sqrt(jnp.mean((target - pred) ** 2))
    assert jnp.allclose(loss, ref, rtol=1e-5, atol=1e-6), (loss, ref)

    print("KERNEL_OK")
</pallas_src>

<mosaic_0001>
module attributes {stable_mosaic.version = 11 : i64} {
  func.func @_partial_sumsq_kernel(%arg0: i32, %arg1: memref<16x128xf32, #tpu.memory_space<vmem>>, %arg2: memref<16x128xf32, #tpu.memory_space<vmem>>, %arg3: memref<1x1x128xf32, #tpu.memory_space<vmem>>) attributes {dimension_semantics = [#tpu.dimension_semantics<parallel>], iteration_bounds = array<i64: 1>, scalar_prefetch = 0 : i64, scratch_operands = 0 : i64, tpu.core_type = #tpu.core_type<tc>, window_params = [{transform_indices = @transform_0, window_bounds = array<i64: 16, 128>}, {transform_indices = @transform_1, window_bounds = array<i64: 16, 128>}, {transform_indices = @transform_2, window_bounds = array<i64: 1, 1, 128>}]} {
    %c0 = arith.constant 0 : index
    %c0_0 = arith.constant 0 : index
    %0 = vector.load %arg1[%c0, %c0_0] : memref<16x128xf32, #tpu.memory_space<vmem>>, vector<16x128xf32>
    %c0_1 = arith.constant 0 : index
    %c0_2 = arith.constant 0 : index
    %1 = vector.load %arg2[%c0_1, %c0_2] : memref<16x128xf32, #tpu.memory_space<vmem>>, vector<16x128xf32>
    %2 = arith.subf %0, %1 : vector<16x128xf32>
    %3 = arith.mulf %2, %2 : vector<16x128xf32>
    %cst = arith.constant dense<0.000000e+00> : vector<128xf32>
    %4 = vector.multi_reduction <add>, %3, %cst [0] : vector<16x128xf32> to vector<128xf32>
    %5 = vector.shape_cast %4 : vector<128xf32> to vector<1x128xf32>
    %6 = vector.shape_cast %5 : vector<1x128xf32> to vector<1x1x128xf32>
    %c0_3 = arith.constant 0 : index
    %c0_4 = arith.constant 0 : index
    %c0_5 = arith.constant 0 : index
    %7 = vector.load %arg3[%c0_3, %c0_4, %c0_5] : memref<1x1x128xf32, #tpu.memory_space<vmem>>, vector<1x1x128xf32>
    tpu.vector_store %arg3[%c0_3, %c0_4, %c0_5], %6 {strides = array<i32>} : memref<1x1x128xf32, #tpu.memory_space<vmem>>, vector<1x1x128xf32>,
    return
  }
  func.func @transform_0(%arg0: i32) -> (i32, i32) {
    %c0_i32 = arith.constant 0 : i32
    %c0_i32_0 = arith.constant 0 : i32
    return %arg0, %c0_i32 : i32, i32
  }
  func.func @transform_1(%arg0: i32) -> (i32, i32) {
    %c0_i32 = arith.constant 0 : i32
    %c0_i32_0 = arith.constant 0 : i32
    return %arg0, %c0_i32 : i32, i32
  }
  func.func @transform_2(%arg0: i32) -> (i32, i32, i32) {
    %c0_i32 = arith.constant 0 : i32
    %c0_i32_0 = arith.constant 0 : i32
    %c0_i32_1 = arith.constant 0 : i32
    return %arg0, %c0_i32, %c0_i32_0 : i32, i32, i32
  }
}

</mosaic_0001>

<llo_original>
// kernel: tpu_custom_call.1
$region0: #{tpu_custom_call.1}
  #allocation0 [shape = 'u32[]', space=smem, size = 0x4, offset = 0x4, fixed_abs, tag = 'smem constant byte address 0x4 - core index']
  #allocation1 [shape = 'u32[144,128]{1,0:T(1,128)}', space=vmem, size = 0x12000, scoped, tag = 'internal scratch']
  %s0 = inlined_call_operand.hbm [shape: f32[16,128], index: 0, kind: input, shape index: {}]
  %s1 = inlined_call_operand.hbm [shape: f32[16,128], index: 1, kind: input, shape index: {}]
  %s2 = inlined_call_operand.hbm [shape: f32[1,1,128], index: 2, kind: output, shape index: {}]
  %s3 = sld [smem:[#allocation0]]
  $region26: #{tpu_custom_call.1} parent=0
    _
  %s5 = ssub.s32 1, %s3
  %s6 = scalar_select 0, %s5, %s3
  $region1: #{tpu_custom_call.1} parent=0
    #allocation2 [shape = 'u8[8192]{0}', space=vmem, size = 0x2000, scoped, tag = 'input window, operand 0, single buffered']
    #allocation3 [shape = 's32[1]{0}', space=sflag, size = 0x4, scoped, tag = 'scoped memory for tpu_custom_call.1']
    #allocation4 [shape = 's32[1]{0}', space=sflag, size = 0x4, scoped, tag = 'scoped memory for tpu_custom_call.1']
    #allocation5 [shape = 'u8[8192]{0}', space=vmem, size = 0x2000, scoped, tag = 'input window, operand 1, single buffered']
    #allocation6 [shape = 's32[1]{0}', space=sflag, size = 0x4, scoped, tag = 'scoped memory for tpu_custom_call.1']
    #allocation7 [shape = 'u8[512]{0}', space=vmem, size = 0x400, scoped, tag = 'output window, operand 0, single buffered']
    %7 = vsyncpa [#allocation3], 0
    %8 = vsyncpa [#allocation6], 0
    %9 = vsyncpa [#allocation4], 0
    // Predicated region
    $region2: #{tpu_custom_call.1} parent=1 // pred_check
      _
    $region3: #{tpu_custom_call.1} parent=1 // pred_check_branch
      %11 = sbr.rel (0) target = $region5
    $region4: #{tpu_custom_call.1} parent=1 // pred_region
      %s13 = ssub.s32 256, 256
      %14 = vsyncadd [#allocation3], %s13
      %s15 = sshll.u32 [#allocation2], 4
      %s16 = int_to_ptr.vmem [resolvable:$true] %s15
      %21 = dma.hbm_to_vmem [thread:$0]  %s0, 256, %s16, [#allocation3], 128, 128, 8
    $region5: #{tpu_custom_call.1} parent=1 // pred_fallthru
      _
    // Predicated region
    $region6: #{tpu_custom_call.1} parent=1 // pred_check
      _
    $region7: #{tpu_custom_call.1} parent=1 // pred_check_branch
      %23 = sbr.rel (0) target = $region9
    $region8: #{tpu_custom_call.1} parent=1 // pred_region
      %s25 = ssub.s32 256, 256
      %26 = vsyncadd [#allocation6], %s25
      %s27 = sshll.u32 [#allocation5], 4
      %s28 = int_to_ptr.vmem [resolvable:$true] %s27
      %33 = dma.hbm_to_vmem [thread:$0]  %s1, 256, %s28, [#allocation6], 128, 128, 8
    $region9: #{tpu_custom_call.1} parent=1 // pred_fallthru
      _
    // Predicated region
    $region10: #{tpu_custom_call.1} parent=1 // pred_check
      _
    $region11: #{tpu_custom_call.1} parent=1 // pred_check_branch
      %35 = sbr.rel (0) target = $region13
    $region12: #{tpu_custom_call.1} parent=1 // pred_region
      %36 = dma.done [#allocation3], 256
    $region13: #{tpu_custom_call.1} parent=1 // pred_fallthru
      _
    // Predicated region
    $region14: #{tpu_custom_call.1} parent=1 // pred_check
      _
    $region15: #{tpu_custom_call.1} parent=1 // pred_check_branch
      %38 = sbr.rel (0) target = $region17
    $region16: #{tpu_custom_call.1} parent=1 // pred_region
      %39 = dma.done [#allocation6], 256
    $region17: #{tpu_custom_call.1} parent=1 // pred_fallthru
      _
    %v40 = vld [vmem:[#allocation2] sm:$0xff]
    %v41 = vld [vmem:[#allocation2 + $0x8] sm:$0xff]
    %v42 = vld [vmem:[#allocation5] sm:$0xff]
    %v43 = vld [vmem:[#allocation5 + $0x8] sm:$0xff]
    %v44 = vsub.f32 %v40, %v42
    %v45 = vsub.f32 %v41, %v43
    %v46 = vmul.f32 %v44, %v44
    %v47 = vmul.f32 %v45, %v45
    %v48 = vadd.f32 %v46, %v47
    %v49 = vrot.slane %v48, 4
    %v50 = vadd.f32 %v48, %v49
    %v51 = vrot.slane %v50, 2
    %v52 = vadd.f32 %v50, %v51
    %v53 = vrot.slane %v52, 1
    %v54 = vadd.f32 %v52, %v53
    %55 = vst [vmem:[#allocation7] sm:$0x1] %v54
    // Predicated region
    $region18: #{tpu_custom_call.1} parent=1 // pred_check
      _
    $region19: #{tpu_custom_call.1} parent=1 // pred_check_branch
      %57 = sbr.rel (0) target = $region21
    $region20: #{tpu_custom_call.1} parent=1 // pred_region
      %s59 = ssub.s32 16, 16
      %60 = vsyncadd [#allocation4], %s59
      %s62 = sshll.u32 [#allocation7], 4
      %s63 = int_to_ptr.vmem [resolvable:$true] %s62
      %65 = dma.vmem_to_hbm [thread:$0]  %s63, 16, %s2, [#allocation4]
    $region21: #{tpu_custom_call.1} parent=1 // pred_fallthru
      _
    // Predicated region
    $region22: #{tpu_custom_call.1} parent=1 // pred_check
      _
    $region23: #{tpu_custom_call.1} parent=1 // pred_check_branch
      %67 = sbr.rel (0) target = $region25
    $region24: #{tpu_custom_call.1} parent=1 // pred_region
      %68 = dma.done [#allocation4], 16
    $region25: #{tpu_custom_call.1} parent=1 // pred_fallthru
      _
    %69 = vsyncpa [#allocation3], 1
    %70 = vsyncpa [#allocation6], 1
    %71 = vsyncpa [#allocation4], 1

</llo_original>
